<compile_context>
chip_gen: v6e
topology: v6e:2x2x1
jax: 0.10.0
libtpu: 0.0.40
codegen_flags: <defaults>
</compile_context>

<pallas_src>
import functools

import jax
import jax.numpy as jnp
from jax.experimental import pallas as pl
from jax.experimental.pallas import tpu as pltpu


def _cdiv(a, b):
    return -(-a // b)


def _round_up(x, mult):
    return _cdiv(x, mult) * mult


# ---------------------------------------------------------------------------
# Kernel
# ---------------------------------------------------------------------------
def _contrastive_kernel(x0_ref, x1_ref, label_ref, out_ref, *,
                        loss_type, margin, a, b, loss_weight, reduction):
    # x0_ref / x1_ref: (1, TILE_P, M) VMEM (leading dim selects the half).
    # label_ref:       (TILE_P, 1)    VMEM.
    # out_ref:         (TILE_P, 1) VMEM ('none')  or  (1, 1) SMEM ('sum'/'mean').
    #
    # Subtract in the native dtype and cast only the diff to f32: one fewer
    # cast per element and half the f32 temp footprint for bf16 inputs
    # (identical math for f32 inputs).
    diff = (x0_ref[0] - x1_ref[0]).astype(jnp.float32)          # (TILE_P, M)
    label = label_ref[...].astype(jnp.float32)                  # (TILE_P, 1)

    dist_sq = jnp.sum(diff * diff, axis=1, keepdims=True)       # (TILE_P, 1)

    if loss_type == "classic":
        dist = jnp.sqrt(dist_sq)      # forward-only; autodiff at 0 would need eps
        mdist = jnp.maximum(margin - dist, 0.0)
        loss = label * dist_sq + (1.0 - label) * (mdist * mdist)
    elif loss_type == "exp":
        dist = jnp.sqrt(dist_sq)
        mdist = jnp.maximum(margin - dist, 0.0)
        loss = label * dist_sq + (1.0 - label) * jnp.exp(mdist)
    elif loss_type == "quadratic":
        mdist = jnp.maximum(b - a * dist_sq, 0.0)
        loss = label * dist_sq + (1.0 - label) * mdist
    else:
        raise ValueError(f"Unknown contrastive type {loss_type}")

    if reduction == "none":
        out_ref[...] = (loss_weight * loss).astype(out_ref.dtype)
    else:
        # Per-tile partial sum -> scalar in SMEM.  loss_weight and the mean
        # division are applied in the wrapper after summing the partials.
        out_ref[0, 0] = jnp.sum(loss)


# ---------------------------------------------------------------------------
# Generation-aware VMEM budgets + tile selection
# ---------------------------------------------------------------------------
def _vmem_budgets():
    """Return (per-input-tile byte budget, vmem_limit_bytes).

    128-MiB-VMEM chips (v5e/v6e): 8 MiB per input tile, 64 MiB scoped limit.
    64-MiB-VMEM chips (v7x) or unknown: 4 MiB per input tile, 40 MiB limit
    (safe on every generation).
    """
    cap = None
    try:
        info = pltpu.get_tpu_info()
        for attr in ("vmem_capacity_bytes", "vmem_bytes"):
            v = getattr(info, attr, None)
            if v is None:
                continue
            try:
                v = int(v)
            except Exception:
                continue
            if v > 0:
                cap = v
                break
    except Exception:
        cap = None
    if cap is not None and cap > 64 * 1024 * 1024:
        return 8 * 1024 * 1024, 64 * 1024 * 1024
    return 4 * 1024 * 1024, 40 * 1024 * 1024


def _choose_tile_p(p, m, itemsize, input_tile_budget, vmem_limit):
    """Pick TILE_P (pairs per grid step).

    * cap by BYTES (per-input-tile budget), never by a fixed row count;
    * keep 2 inputs x 2 pipeline buffers + f32 diff/square temps under ~75%
      of vmem_limit;
    * align to the dtype's sublane packing (8 f32 / 16 bf16 / 32 int8-fp8);
    * guarantee >= 2 grid steps (pipelining; v7x megacore) when P allows,
      preferring 4 steps if each tile still holds >= ~1 MiB of input.
    """
    pack = 8 * max(1, 4 // max(1, itemsize))

    rows = input_tile_budget // max(1, m * itemsize)
    per_row_total = 4 * m * itemsize + 2 * m * 4     # dbl-buffered inputs + f32 temps
    rows = min(rows, (3 * vmem_limit // 4) // max(1, per_row_total))
    tile_p = max(pack, (rows // pack) * pack)

    if tile_p >= p:
        if p > pack:
            # Everything fits in one tile: split anyway so the pipeline
            # double-buffers and v7x can shard tiles across both TensorCores.
            min_rows = max(pack, _round_up(max(1, (1 << 20) // max(1, m * itemsize)), pack))
            cand4 = _round_up(_cdiv(p, 4), pack)
            cand2 = _round_up(_cdiv(p, 2), pack)
            if cand4 >= min_rows and cand4 < p:
                tile_p = cand4
            elif cand2 < p:
                tile_p = cand2
            else:
                tile_p = p
        else:
            tile_p = p
    return tile_p


# ---------------------------------------------------------------------------
# Wrapper
# ---------------------------------------------------------------------------
def contrastive_loss(x, label, *, contrastive, loss_weight=1.0,
                     reduction="mean", avg_factor=None, tile_p=None):
    """Pallas-backed ContrastiveLoss.forward (weight=None path).

    x:     (N, M) array (any float dtype; DMA'd natively, cast to f32 on-core).
    label: (N//2,) array of 0/1.
    Returns a scalar for reduction in {'mean','sum'}, or (N//2,) for 'none'.
    """
    if reduction not in ("none", "sum", "mean"):
        raise ValueError(f"Unknown reduction {reduction}")
    loss_type = contrastive["type"]
    if loss_type not in ("classic", "exp", "quadratic"):
        raise ValueError(f"Unknown contrastive type {loss_type}")

    n, m = x.shape
    assert n % 2 == 0, "batch size must be even"
    p = n // 2
    itemsize = jnp.dtype(x.dtype).itemsize

    input_tile_budget, vmem_limit = _vmem_budgets()
    if tile_p is None:
        tile_p = _choose_tile_p(p, m, itemsize, input_tile_budget, vmem_limit)
    tile_p = int(tile_p)

    num_tiles = _cdiv(p, tile_p)
    p_pad = num_tiles * tile_p
    assert tile_p % 8 == 0 or (num_tiles == 1 and p_pad == p), \
        f"tile_p={tile_p} must be a multiple of 8 (or cover all {p} pairs)"

    # Free reshapes -- no dtype cast, no data movement for divisible P.
    x_pairs = x.reshape(2, p, m)          # [0] == x0 half, [1] == x1 half
    label2d = label.reshape(p, 1)

    if p_pad != p:
        # Masked tail: pad pairs with x0 == x1 == 0 and label == 1, so padded
        # rows contribute exactly 0 loss for every loss type.
        pad = p_pad - p
        x_pairs = jnp.pad(x_pairs, ((0, 0), (0, pad), (0, 0)))
        label2d = jnp.pad(label2d, ((0, pad), (0, 0)), constant_values=1)

    margin = float(contrastive.get("margin", 0.0))
    a = float(contrastive.get("a", 0.0))
    b = float(contrastive.get("b", 0.0))

    kernel = functools.partial(
        _contrastive_kernel,
        loss_type=loss_type, margin=margin, a=a, b=b,
        loss_weight=float(loss_weight), reduction=reduction)

    in_specs = [
        # x0 tiles: half 0, pair-tile i
        pl.BlockSpec((1, tile_p, m), lambda i: (0, i, 0)),
        # x1 tiles: half 1, pair-tile i
        pl.BlockSpec((1, tile_p, m), lambda i: (1, i, 0)),
        # label tiles aligned with the pair-tile grid
        pl.BlockSpec((tile_p, 1), lambda i: (i, 0)),
    ]

    if reduction == "none":
        out_shape = jax.ShapeDtypeStruct((p_pad, 1), jnp.float32)
        out_specs = pl.BlockSpec((tile_p, 1), lambda i: (i, 0))
        out_bytes = p_pad * 4
    else:
        # One partial sum per tile via SMEM; each tile owns its own output
        # block so the grid axis stays "parallel" (v7x megacore sharding).
        out_shape = jax.ShapeDtypeStruct((num_tiles, 1), jnp.float32)
        out_specs = pl.BlockSpec((1, 1), lambda i: (i, 0),
                                 memory_space=pltpu.MemorySpace.SMEM)
        out_bytes = num_tiles * 4

    label_itemsize = jnp.dtype(label.dtype).itemsize
    cost = pl.CostEstimate(
        flops=3 * p_pad * m + 8 * p_pad,
        transcendentals=(2 * p_pad if loss_type == "exp"
                         else (p_pad if loss_type == "classic" else 0)),
        bytes_accessed=2 * p_pad * m * itemsize + p_pad * label_itemsize + out_bytes)

    out = pl.pallas_call(
        kernel,
        grid=(num_tiles,),
        in_specs=in_specs,
        out_specs=out_specs,
        out_shape=out_shape,
        compiler_params=pltpu.CompilerParams(
            dimension_semantics=("parallel",),
            vmem_limit_bytes=vmem_limit),
        cost_estimate=cost,
    )(x_pairs, x_pairs, label2d)

    if reduction == "none":
        return out[:p, 0]

    total = jnp.sum(out)
    if reduction == "sum":
        return loss_weight * total
    denom = float(avg_factor) if avg_factor is not None else float(p)
    return loss_weight * total / denom


# ---------------------------------------------------------------------------
# Pure-JAX reference (mirrors the PyTorch code)
# ---------------------------------------------------------------------------
def _reference(x, label, contrastive, loss_weight, reduction, avg_factor=None):
    n = x.shape[0]
    p = n // 2
    x0, x1 = x[:p].astype(jnp.float32), x[p:].astype(jnp.float32)
    diff = x0 - x1
    dist_sq = jnp.sum(diff ** 2, axis=1)
    label = label.reshape(-1).astype(jnp.float32)
    t = contrastive["type"]
    if t == "classic":
        dist = jnp.sqrt(dist_sq)
        md = jnp.maximum(contrastive["margin"] - dist, 0.0)
        loss = label * dist_sq + (1 - label) * md ** 2
    elif t == "exp":
        dist = jnp.sqrt(dist_sq)
        md = jnp.maximum(contrastive["margin"] - dist, 0.0)
        loss = label * dist_sq + (1 - label) * jnp.exp(md)
    else:  # quadratic
        md = jnp.maximum(contrastive["b"] - contrastive["a"] * dist_sq, 0.0)
        loss = label * dist_sq + (1 - label) * md
    if reduction == "mean":
        if avg_factor is not None:
            loss = jnp.sum(loss) / float(avg_factor)
        else:
            loss = jnp.mean(loss)
    elif reduction == "sum":
        loss = jnp.sum(loss)
    return loss_weight * loss


# ---------------------------------------------------------------------------
# Self-test
# ---------------------------------------------------------------------------
if __name__ == "__main__":
    key = jax.random.PRNGKey(0)
    configs = [
        dict(type="classic", margin=1.0),
        dict(type="exp", margin=1.0),
        dict(type="quadratic", a=0.5, b=2.0),
    ]

    ok = True

    def check(x, label, cfg, red, tile_p=None, avg_factor=None, tag="",
              rtol=1e-5, atol=1e-5):
        global ok
        out = contrastive_loss(x, label, contrastive=cfg, loss_weight=1.0,
                               reduction=red, avg_factor=avg_factor,
                               tile_p=tile_p)
        out = jax.block_until_ready(out)
        ref = _reference(x, label, cfg, 1.0, red, avg_factor=avg_factor)
        if not jnp.allclose(out, ref, rtol=rtol, atol=atol):
            ok = False
            print(f"MISMATCH {tag} {cfg['type']}/{red}: {out} vs {ref}")

    k1, k2, k3, k4, k5, k6 = jax.random.split(key, 6)

    # Small case: 4 pairs of length 32 (single tile, TILE_P == P == 4 < pack).
    N1, M1 = 8, 32
    x1 = jax.random.normal(k1, (N1, M1), dtype=jnp.float32)
    l1 = (jax.random.uniform(k2, (N1 // 2,)) > 0.5).astype(jnp.float32)
    for cfg in configs:
        for red in ("mean", "sum", "none"):
            check(x1, l1, cfg, red, tag="small")

    # Multi-tile case: 32 pairs of length 128 with TILE_P=8 (4 grid steps),
    # exercises the tiled pipeline + per-tile partial-sum path.
    N2, M2 = 64, 128
    x2 = jax.random.normal(k3, (N2, M2), dtype=jnp.float32)
    l2 = (jax.random.uniform(k4, (N2 // 2,)) > 0.5).astype(jnp.float32)
    for cfg in configs:
        for red in ("mean", "sum", "none"):
            check(x2, l2, cfg, red, tile_p=8, tag="tiled")

    # Default tile picker (>=2-step guarantee) on the same data.
    check(x2, l2, configs[0], "mean", tag="auto-tile")
    check(x2, l2, configs[1], "none", tag="auto-tile")

    # Padded-tail case: 22 pairs, TILE_P=8 -> 3 grid steps, 2 padded rows.
    N3, M3 = 44, 128
    x3 = jax.random.normal(k5, (N3, M3), dtype=jnp.float32)
    l3 = (jax.random.uniform(k6, (N3 // 2,)) > 0.5).astype(jnp.float32)
    for cfg in configs:
        for red in ("mean", "sum", "none"):
            check(x3, l3, cfg, red, tile_p=8, tag="padded")

    # bf16 inputs: native-dtype subtract path, 16-row sublane packing.
    x2_bf16 = x2.astype(jnp.bfloat16)
    check(x2_bf16, l2, configs[0], "sum", tag="bf16", rtol=5e-2, atol=5e-2)

    # avg_factor path for 'mean'.
    check(x2, l2, configs[0], "mean", tile_p=8, avg_factor=10.0, tag="avgf")

    if ok:
        print("KERNEL_OK")
</pallas_src>

<mosaic_0001>
module attributes {stable_mosaic.version = 11 : i64} {
  func.func @_contrastive_kernel(%arg0: i32, %arg1: memref<1x4x32xf32, #tpu.memory_space<vmem>>, %arg2: memref<1x4x32xf32, #tpu.memory_space<vmem>>, %arg3: memref<4x1xf32, #tpu.memory_space<vmem>>, %arg4: memref<1x1xf32, #tpu.memory_space<smem>>) attributes {dimension_semantics = [#tpu.dimension_semantics<parallel>], iteration_bounds = array<i64: 1>, scalar_prefetch = 0 : i64, scratch_operands = 0 : i64, tpu.core_type = #tpu.core_type<tc>, window_params = [{transform_indices = @transform_0, window_bounds = array<i64: 1, 4, 32>}, {transform_indices = @transform_1, window_bounds = array<i64: 1, 4, 32>}, {transform_indices = @transform_2, window_bounds = array<i64: 4, 1>}, {transform_indices = @transform_3, window_bounds = array<i64: 1, 1>}]} {
    %c0 = arith.constant 0 : index
    %c0_0 = arith.constant 0 : index
    %c0_1 = arith.constant 0 : index
    %0 = vector.load %arg1[%c0, %c0_0, %c0_1] : memref<1x4x32xf32, #tpu.memory_space<vmem>>, vector<1x4x32xf32>
    %1 = vector.shape_cast %0 : vector<1x4x32xf32> to vector<4x32xf32>
    %c0_2 = arith.constant 0 : index
    %c0_3 = arith.constant 0 : index
    %c0_4 = arith.constant 0 : index
    %2 = vector.load %arg2[%c0_2, %c0_3, %c0_4] : memref<1x4x32xf32, #tpu.memory_space<vmem>>, vector<1x4x32xf32>
    %3 = vector.shape_cast %2 : vector<1x4x32xf32> to vector<4x32xf32>
    %4 = arith.subf %1, %3 : vector<4x32xf32>
    %c0_5 = arith.constant 0 : index
    %c0_6 = arith.constant 0 : index
    %5 = vector.load %arg3[%c0_5, %c0_6] : memref<4x1xf32, #tpu.memory_space<vmem>>, vector<4x1xf32>
    %6 = arith.mulf %4, %4 : vector<4x32xf32>
    %cst = arith.constant dense<0.000000e+00> : vector<4xf32>
    %7 = vector.multi_reduction <add>, %6, %cst [1] : vector<4x32xf32> to vector<4xf32>
    %8 = vector.shape_cast %7 : vector<4xf32> to vector<4x1xf32>
    %9 = math.sqrt %8 : vector<4x1xf32>
    %cst_7 = arith.constant 1.000000e+00 : f32
    %10 = vector.broadcast %cst_7 : f32 to vector<4x1xf32>
    %11 = arith.subf %10, %9 : vector<4x1xf32>
    %cst_8 = arith.constant 0.000000e+00 : f32
    %12 = vector.broadcast %cst_8 : f32 to vector<4x1xf32>
    %13 = arith.maximumf %11, %12 : vector<4x1xf32>
    %14 = arith.mulf %5, %8 : vector<4x1xf32>
    %cst_9 = arith.constant 1.000000e+00 : f32
    %15 = vector.broadcast %cst_9 : f32 to vector<4x1xf32>
    %16 = arith.subf %15, %5 : vector<4x1xf32>
    %17 = arith.mulf %13, %13 : vector<4x1xf32>
    %18 = arith.mulf %16, %17 : vector<4x1xf32>
    %19 = arith.addf %14, %18 : vector<4x1xf32>
    %20 = vector.shape_cast %19 : vector<4x1xf32> to vector<1x4x1xf32>
    %cst_10 = arith.constant dense<0.000000e+00> : vector<1xf32>
    %21 = vector.multi_reduction <add>, %20, %cst_10 [1, 2] : vector<1x4x1xf32> to vector<1xf32>
    %22 = vector.shape_cast %21 : vector<1xf32> to vector<1x1x1xf32>
    %23 = vector.extract %22[0, 0, 0] : f32 from vector<1x1x1xf32>
    %c0_11 = arith.constant 0 : index
    %c0_12 = arith.constant 0 : index
    %24 = memref.load %arg4[%c0_11, %c0_12] : memref<1x1xf32, #tpu.memory_space<smem>>
    memref.store %23, %arg4[%c0_11, %c0_12] : memref<1x1xf32, #tpu.memory_space<smem>>
    return
  }
  func.func @transform_0(%arg0: i32) -> (i32, i32, i32) {
    %c0_i32 = arith.constant 0 : i32
    %c0_i32_0 = arith.constant 0 : i32
    %c0_i32_1 = arith.constant 0 : i32
    return %c0_i32, %arg0, %c0_i32_0 : i32, i32, i32
  }
  func.func @transform_1(%arg0: i32) -> (i32, i32, i32) {
    %c1_i32 = arith.constant 1 : i32
    %c0_i32 = arith.constant 0 : i32
    %c0_i32_0 = arith.constant 0 : i32
    return %c1_i32, %arg0, %c0_i32 : i32, i32, i32
  }
  func.func @transform_2(%arg0: i32) -> (i32, i32) {
    %c0_i32 = arith.constant 0 : i32
    %c0_i32_0 = arith.constant 0 : i32
    return %arg0, %c0_i32 : i32, i32
  }
  func.func @transform_3(%arg0: i32) -> (i32, i32) {
    %c0_i32 = arith.constant 0 : i32
    %c0_i32_0 = arith.constant 0 : i32
    return %arg0, %c0_i32 : i32, i32
  }
}

</mosaic_0001>

<llo_original>
// kernel: tpu_custom_call.1
$region0: #{tpu_custom_call.1}
  #allocation0 [shape = 'u32[]', space=smem, size = 0x4, offset = 0x4, fixed_abs, tag = 'smem constant byte address 0x4 - core index']
  #allocation1 [shape = 'u32[144,128]{1,0:T(1,128)}', space=vmem, size = 0x12000, scoped, tag = 'internal scratch']
  %s0 = inlined_call_operand.hbm [shape: f32[2,4,32], index: 0, kind: input, shape index: {}]
  %s1 = inlined_call_operand.hbm [shape: f32[2,4,32], index: 1, kind: input, shape index: {}]
  %s2 = inlined_call_operand.vmem [shape: f32[4,1], index: 2, kind: input, shape index: {}]
  %s3 = inlined_call_operand.hbm [shape: f32[1,1], index: 3, kind: output, shape index: {}]
  %s4 = sld [smem:[#allocation0]]
  $region30: #{tpu_custom_call.1} parent=0
    _
  %s6 = ssub.s32 1, %s4
  %s7 = scalar_select 0, %s6, %s4
  $region1: #{tpu_custom_call.1} parent=0
    #allocation2 [shape = 'u8[2048]{0}', space=vmem, size = 0x800, scoped, tag = 'input window, operand 0, single buffered']
    #allocation3 [shape = 's32[1]{0}', space=sflag, size = 0x4, scoped, tag = 'scoped memory for tpu_custom_call.1']
    #allocation4 [shape = 's32[1]{0}', space=sflag, size = 0x4, scoped, tag = 'scoped memory for tpu_custom_call.1']
    #allocation5 [shape = 'u8[2048]{0}', space=vmem, size = 0x800, scoped, tag = 'input window, operand 1, single buffered']
    #allocation6 [shape = 's32[1]{0}', space=sflag, size = 0x4, scoped, tag = 'scoped memory for tpu_custom_call.1']
    #allocation7 [shape = 'u8[512]{0}', space=smem, size = 0x200, scoped, tag = 'output window, operand 0, single buffered']
    %8 = vsyncpa [#allocation3], 0
    %9 = vsyncpa [#allocation6], 0
    %10 = vsyncpa [#allocation4], 0
    // Predicated region
    $region2: #{tpu_custom_call.1} parent=1 // pred_check
      _
    $region3: #{tpu_custom_call.1} parent=1 // pred_check_branch
      %12 = sbr.rel (0) target = $region5
    $region4: #{tpu_custom_call.1} parent=1 // pred_region
      %s14 = ssub.s32 64, 64
      %15 = vsyncadd [#allocation3], %s14
      %s17 = sshll.u32 [#allocation2], 4
      %s18 = int_to_ptr.vmem [resolvable:$true] %s17
      %20 = dma.hbm_to_vmem [thread:$0]  %s0, 64, %s18, [#allocation3]
    $region5: #{tpu_custom_call.1} parent=1 // pred_fallthru
      _
    // Predicated region
    $region6: #{tpu_custom_call.1} parent=1 // pred_check
      _
    $region7: #{tpu_custom_call.1} parent=1 // pred_check_branch
      %22 = sbr.rel (0) target = $region9
    $region8: #{tpu_custom_call.1} parent=1 // pred_region
      %s24 = ssub.s32 64, 64
      %25 = vsyncadd [#allocation6], %s24
      %s26 = scalar_lea.hbm %s1, 64
      %s28 = sshll.u32 [#allocation5], 4
      %s29 = int_to_ptr.vmem [resolvable:$true] %s28
      %31 = dma.hbm_to_vmem [thread:$0]  %s26, 64, %s29, [#allocation6]
    $region9: #{tpu_custom_call.1} parent=1 // pred_fallthru
      _
    // Predicated region
    $region10: #{tpu_custom_call.1} parent=1 // pred_check
      _
    $region11: #{tpu_custom_call.1} parent=1 // pred_check_branch
      %33 = sbr.rel (0) target = $region13
    $region12: #{tpu_custom_call.1} parent=1 // pred_region
      _
    $region13: #{tpu_custom_call.1} parent=1 // pred_fallthru
      _
    // Predicated region
    $region14: #{tpu_custom_call.1} parent=1 // pred_check
      _
    $region15: #{tpu_custom_call.1} parent=1 // pred_check_branch
      %35 = sbr.rel (0) target = $region17
    $region16: #{tpu_custom_call.1} parent=1 // pred_region
      %36 = dma.done [#allocation3], 64
    $region17: #{tpu_custom_call.1} parent=1 // pred_fallthru
      _
    // Predicated region
    $region18: #{tpu_custom_call.1} parent=1 // pred_check
      _
    $region19: #{tpu_custom_call.1} parent=1 // pred_check_branch
      %38 = sbr.rel (0) target = $region21
    $region20: #{tpu_custom_call.1} parent=1 // pred_region
      %39 = dma.done [#allocation6], 64
    $region21: #{tpu_custom_call.1} parent=1 // pred_fallthru
      _
    %v40 = vld [vmem:[#allocation2] sm:$0xf]
    %v41 = vld [vmem:[#allocation5] sm:$0xf]
    %v42 = vsub.f32 %v40, %v41
    %v43 = vld [vmem:[%s2] sm:$0xf]
    %v44 = vmul.f32 %v42, %v42
    %vm45 = vcmask 257024
    %v46 = vsel %vm45, %v44, 0.0
    %47 = vadd.xlane.f32.xlu0 %v46
    %v48 = vpop.xlane.xlu0 %47
    %v49 = vrsqrt.pop %v48
    %v50 = vmul.f32 %v48, %v49
    %vm51 = vcmp.eq.f32.partialorder %v48, inf
    %v52 = vsel %vm51, %v48, %v50
    %vm53 = vcmp.eq.f32.partialorder %v48, 0.0
    %v54 = vand.u32 %v48, 2147483648
    %v55 = vsel %vm53, %v54, %v52
    %v56 = vsub.f32 1.0, %v55
    %v57 = vmax.f32 %v56, 0.0
    %v58 = vmul.f32 %v43, %v48
    %v59 = vsub.f32 1.0, %v43
    %v60 = vmul.f32 %v57, %v57
    %v61 = vmul.f32 %v59, %v60
    %v62 = vadd.f32 %v58, %v61
    %vm63 = vcmask 3072
    %v64 = vsel %vm63, %v62, 0.0
    %65 = vadd.xlane.f32.xlu0 %v64
    %v66 = vpop.xlane.xlu0 %65
    %v67 = vrot.slane %v66, 4
    %v68 = vadd.f32 %v66, %v67
    %v69 = vrot.slane %v68, 2
    %v70 = vadd.f32 %v68, %v69
    %v71 = vrot.slane %v70, 1
    %v72 = vadd.f32 %v70, %v71
    %s73 = vtos %v72
    %s74 = scalar_lea.smem [#allocation7], 0
    %75 = sst [smem:[%s74]] %s73
    // Predicated region
    $region22: #{tpu_custom_call.1} parent=1 // pred_check
      _
    $region23: #{tpu_custom_call.1} parent=1 // pred_check_branch
      %77 = sbr.rel (0) target = $region25
    $region24: #{tpu_custom_call.1} parent=1 // pred_region
      %s79 = ssub.s32 16, 16
      %80 = vsyncadd [#allocation4], %s79
      %83 = dma.smem_to_hbm [#allocation7], 16, %s3, [#allocation4]
    $region25: #{tpu_custom_call.1} parent=1 // pred_fallthru
      _
    // Predicated region
    $region26: #{tpu_custom_call.1} parent=1 // pred_check
      _
    $region27: #{tpu_custom_call.1} parent=1 // pred_check_branch
      %85 = sbr.rel (0) target = $region29
    $region28: #{tpu_custom_call.1} parent=1 // pred_region
      %86 = dma.done [#allocation4], 16
    $region29: #{tpu_custom_call.1} parent=1 // pred_fallthru
      _
    %87 = sfence
    %88 = vsyncpa [#allocation3], 1
    %89 = vsyncpa [#allocation6], 1
    %90 = vsyncpa [#allocation4], 1

</llo_original>
